<compile_context>
chip_gen: v5e
topology: v5e:2x2
jax: 0.10.0
libtpu: 0.0.40
codegen_flags: <defaults>
</compile_context>

<pallas_src>
import math
import functools

import jax
import jax.numpy as jnp
from jax.experimental import pallas as pl
from jax.experimental.pallas import tpu as pltpu


def _self_attention_kernel(x_ref, w_ref, b_ref, o_ref, *, qk_dim, v_dim, dk):
    tb, s, d_in = x_ref.shape          # (block_b, S, D_in), bf16
    f = 2 * qk_dim + v_dim

    # Fused Q|K|V projection: one MXU matmul over block_b*S rows, f32 accum.
    x2 = x_ref[...].reshape(tb * s, d_in)                       # bf16
    qkv = jnp.dot(x2, w_ref[...],
                  preferred_element_type=jnp.float32) + b_ref[...]  # (tb*s, f) f32

    scale = 1.0 / math.sqrt(dk)
    q = (qkv[:, :qk_dim] * scale).reshape(tb, s, qk_dim).astype(jnp.bfloat16)
    k = qkv[:, qk_dim:2 * qk_dim].reshape(tb, s, qk_dim).astype(jnp.bfloat16)
    v = qkv[:, 2 * qk_dim:f].reshape(tb, s, v_dim).astype(jnp.bfloat16)

    # Per-batch scaled dot-product scores, no explicit transpose.
    scores = jnp.einsum("bqd,bkd->bqk", q, k,
                        preferred_element_type=jnp.float32)      # (tb, s, s) f32

    # Stable softmax over the last axis (== torch dim=2).
    scores = scores - jnp.max(scores, axis=-1, keepdims=True)
    p = jnp.exp(scores)
    p = p * pl.reciprocal(jnp.sum(p, axis=-1, keepdims=True), approx=True)

    # Context: (tb, s, v_dim), f32 accumulation from bf16 operands.
    ctx = jnp.einsum("bqk,bkd->bqd", p.astype(jnp.bfloat16), v,
                     preferred_element_type=jnp.float32)
    o_ref[...] = ctx.astype(o_ref.dtype)


def self_attention(x, wq, bq, wk, bk, wv, bv, dk, *, block_b=None, target_rows=256):
    """x: (B, S, D_in); w*: (D_in, out_dim) pre-transposed; b*: (1, out_dim)."""
    B, S, D_in = x.shape
    qk_dim = wq.shape[1]
    v_dim = wv.shape[1]
    f = 2 * qk_dim + v_dim

    # Fuse QKV params; cast matmul inputs to bf16 (halves HBM traffic, bf16 MXU).
    w_fused = jnp.concatenate([wq, wk, wv], axis=1).astype(jnp.bfloat16)   # (D_in, f)
    b_fused = jnp.concatenate([bq, bk, bv], axis=1).astype(jnp.float32)    # (1, f)
    x_bf16 = x.astype(jnp.bfloat16)

    # Choose how many batch elements to pack per grid step (~target_rows rows).
    if block_b is None:
        block_b = max(1, min(B, target_rows // max(S, 1)))
    while B % block_b:
        block_b -= 1

    kernel = functools.partial(_self_attention_kernel,
                               qk_dim=qk_dim, v_dim=v_dim, dk=dk)

    return pl.pallas_call(
        kernel,
        out_shape=jax.ShapeDtypeStruct((B, S, v_dim), jnp.float32),
        grid_spec=pltpu.PrefetchScalarGridSpec(
            num_scalar_prefetch=0,
            grid=(B // block_b,),
            in_specs=[
                pl.BlockSpec((block_b, S, D_in), lambda i: (i, 0, 0)),  # x
                pl.BlockSpec((D_in, f), lambda i: (0, 0)),              # fused W
                pl.BlockSpec((1, f), lambda i: (0, 0)),                 # fused b
            ],
            out_specs=pl.BlockSpec((block_b, S, v_dim), lambda i: (i, 0, 0)),
        ),
        compiler_params=pltpu.CompilerParams(
            dimension_semantics=("parallel",),
            vmem_limit_bytes=32 * 1024 * 1024,
        ),
    )(x_bf16, w_fused, b_fused)


def self_attention_ref(x, wq, bq, wk, bk, wv, bv, dk):
    q = x @ wq + bq
    k = x @ wk + bk
    v = x @ wv + bv
    attn = jnp.einsum("bqd,bkd->bqk", q, k) / math.sqrt(dk)
    attn = jax.nn.softmax(attn, axis=2)
    return jnp.einsum("bqk,bkd->bqd", attn, v)


if __name__ == "__main__":
    # Module config (small, consistent with the forward pass):
    B, S = 2, 8
    input_dim, qk_dim, v_dim = 32, 16, 16
    dk = qk_dim  # dk=None in __init__ -> dk = qk_dim

    key = jax.random.PRNGKey(0)
    kx, kwq, kbq, kwk, kbk, kwv, kbv = jax.random.split(key, 7)

    x = jax.random.normal(kx, (B, S, input_dim), dtype=jnp.float32)

    # Deterministic parameter init (nn.Linear-style uniform bound 1/sqrt(fan_in)),
    # stored pre-transposed as (in, out).
    bound = 1.0 / math.sqrt(input_dim)
    wq = jax.random.uniform(kwq, (input_dim, qk_dim), jnp.float32, -bound, bound)
    bq = jax.random.uniform(kbq, (1, qk_dim), jnp.float32, -bound, bound)
    wk = jax.random.uniform(kwk, (input_dim, qk_dim), jnp.float32, -bound, bound)
    bk = jax.random.uniform(kbk, (1, qk_dim), jnp.float32, -bound, bound)
    wv = jax.random.uniform(kwv, (input_dim, v_dim), jnp.float32, -bound, bound)
    bv = jax.random.uniform(kbv, (1, v_dim), jnp.float32, -bound, bound)

    out = self_attention(x, wq, bq, wk, bk, wv, bv, dk)
    out = jax.block_until_ready(out)
    assert out.shape == (B, S, v_dim)

    # Reference on the same bf16-rounded inputs the kernel sees; tolerance
    # loosened for bf16 MXU matmuls + approx reciprocal (per perf review).
    q16 = lambda a: a.astype(jnp.bfloat16).astype(jnp.float32)
    ref = self_attention_ref(q16(x), q16(wq), bq, q16(wk), bk, q16(wv), bv, dk)
    assert jnp.allclose(out, ref, atol=2e-2, rtol=2e-2), "mismatch vs reference"

    print("KERNEL_OK")
</pallas_src>

<mosaic_0001>
module attributes {stable_mosaic.version = 11 : i64} {
  func.func @_self_attention_kernel(%arg0: i32, %arg1: memref<2x8x32xbf16, #tpu.memory_space<vmem>>, %arg2: memref<32x48xbf16, #tpu.memory_space<vmem>>, %arg3: memref<1x48xf32, #tpu.memory_space<vmem>>, %arg4: memref<2x8x16xf32, #tpu.memory_space<vmem>>) attributes {dimension_semantics = [#tpu.dimension_semantics<parallel>], iteration_bounds = array<i64: 1>, scalar_prefetch = 0 : i64, scratch_operands = 0 : i64, tpu.core_type = #tpu.core_type<tc>, window_params = [{transform_indices = @transform_0, window_bounds = array<i64: 2, 8, 32>}, {pipeline_mode = #tpu.pipeline_mode<synchronous>, transform_indices = @transform_1, window_bounds = array<i64: 32, 48>}, {pipeline_mode = #tpu.pipeline_mode<synchronous>, transform_indices = @transform_2, window_bounds = array<i64: 1, 48>}, {transform_indices = @transform_3, window_bounds = array<i64: 2, 8, 16>}]} {
    %c0 = arith.constant 0 : index
    %c0_0 = arith.constant 0 : index
    %c0_1 = arith.constant 0 : index
    %0 = vector.load %arg1[%c0, %c0_0, %c0_1] : memref<2x8x32xbf16, #tpu.memory_space<vmem>>, vector<2x8x32xbf16>
    %1 = vector.shape_cast %0 : vector<2x8x32xbf16> to vector<16x32xbf16>
    %c0_2 = arith.constant 0 : index
    %c0_3 = arith.constant 0 : index
    %2 = vector.load %arg2[%c0_2, %c0_3] : memref<32x48xbf16, #tpu.memory_space<vmem>>, vector<32x48xbf16>
    %cst = arith.constant dense<0.000000e+00> : vector<16x48xf32>
    %3 = tpu.matmul %1, %2, %cst {dimension_numbers = #tpu.dot_dimension_numbers<[1], [0], [0], [1], [0, 0, 1, 1], [], []>} : vector<16x32xbf16>, vector<32x48xbf16>, vector<16x48xf32> -> vector<16x48xf32>
    %c0_4 = arith.constant 0 : index
    %c0_5 = arith.constant 0 : index
    %4 = vector.load %arg3[%c0_4, %c0_5] : memref<1x48xf32, #tpu.memory_space<vmem>>, vector<1x48xf32>
    %5 = vector.broadcast %4 : vector<1x48xf32> to vector<16x48xf32>
    %6 = arith.addf %3, %5 : vector<16x48xf32>
    %7 = vector.extract_strided_slice %6 {offsets = [0, 0], sizes = [16, 16], strides = [1, 1]} : vector<16x48xf32> to vector<16x16xf32>
    %cst_6 = arith.constant 2.500000e-01 : f32
    %8 = vector.broadcast %cst_6 : f32 to vector<16x16xf32>
    %9 = arith.mulf %7, %8 : vector<16x16xf32>
    %10 = vector.shape_cast %9 : vector<16x16xf32> to vector<2x8x16xf32>
    %11 = arith.truncf %10 : vector<2x8x16xf32> to vector<2x8x16xbf16>
    %12 = vector.extract_strided_slice %6 {offsets = [0, 16], sizes = [16, 16], strides = [1, 1]} : vector<16x48xf32> to vector<16x16xf32>
    %13 = vector.shape_cast %12 : vector<16x16xf32> to vector<2x8x16xf32>
    %14 = arith.truncf %13 : vector<2x8x16xf32> to vector<2x8x16xbf16>
    %15 = vector.extract_strided_slice %6 {offsets = [0, 32], sizes = [16, 16], strides = [1, 1]} : vector<16x48xf32> to vector<16x16xf32>
    %16 = vector.shape_cast %15 : vector<16x16xf32> to vector<2x8x16xf32>
    %17 = arith.truncf %16 : vector<2x8x16xf32> to vector<2x8x16xbf16>
    "tpu.trace_start"() <{level = 10 : i32, message = "bqd,bkd->bqk"}> : () -> ()
    %cst_7 = arith.constant dense<0.000000e+00> : vector<2x8x8xf32>
    %18 = tpu.matmul %11, %14, %cst_7 {dimension_numbers = #tpu.dot_dimension_numbers<[2], [2], [1], [1], [0, 0, 0, 1, 1, 1], [0], [0]>} : vector<2x8x16xbf16>, vector<2x8x16xbf16>, vector<2x8x8xf32> -> vector<2x8x8xf32>
    "tpu.trace_stop"() : () -> ()
    %cst_8 = arith.constant dense<0xFF800000> : vector<2x8xf32>
    %19 = vector.multi_reduction <maximumf>, %18, %cst_8 [2] : vector<2x8x8xf32> to vector<2x8xf32>
    %20 = vector.shape_cast %19 : vector<2x8xf32> to vector<2x8x1xf32>
    %21 = vector.broadcast %20 : vector<2x8x1xf32> to vector<2x8x8xf32>
    %22 = arith.subf %18, %21 : vector<2x8x8xf32>
    %23 = math.exp %22 : vector<2x8x8xf32>
    %cst_9 = arith.constant dense<0.000000e+00> : vector<2x8xf32>
    %24 = vector.multi_reduction <add>, %23, %cst_9 [2] : vector<2x8x8xf32> to vector<2x8xf32>
    %25 = vector.shape_cast %24 : vector<2x8xf32> to vector<2x8x1xf32>
    %26 = tpu.reciprocal %25 {approx = true} : vector<2x8x1xf32> -> vector<2x8x1xf32>
    %27 = vector.broadcast %26 : vector<2x8x1xf32> to vector<2x8x8xf32>
    %28 = arith.mulf %23, %27 : vector<2x8x8xf32>
    %29 = arith.truncf %28 : vector<2x8x8xf32> to vector<2x8x8xbf16>
    "tpu.trace_start"() <{level = 10 : i32, message = "bqk,bkd->bqd"}> : () -> ()
    %cst_10 = arith.constant dense<0.000000e+00> : vector<2x8x16xf32>
    %30 = tpu.matmul %29, %17, %cst_10 {dimension_numbers = #tpu.dot_dimension_numbers<[2], [1], [1], [2], [0, 0, 0, 1, 1, 2], [0], [0]>} : vector<2x8x8xbf16>, vector<2x8x16xbf16>, vector<2x8x16xf32> -> vector<2x8x16xf32>
    "tpu.trace_stop"() : () -> ()
    %c0_11 = arith.constant 0 : index
    %c0_12 = arith.constant 0 : index
    %c0_13 = arith.constant 0 : index
    %31 = vector.load %arg4[%c0_11, %c0_12, %c0_13] : memref<2x8x16xf32, #tpu.memory_space<vmem>>, vector<2x8x16xf32>
    tpu.vector_store %arg4[%c0_11, %c0_12, %c0_13], %30 {strides = array<i32>} : memref<2x8x16xf32, #tpu.memory_space<vmem>>, vector<2x8x16xf32>,
    return
  }
  func.func @transform_0(%arg0: i32) -> (i32, i32, i32) {
    %c0_i32 = arith.constant 0 : i32
    %c0_i32_0 = arith.constant 0 : i32
    %c0_i32_1 = arith.constant 0 : i32
    return %arg0, %c0_i32, %c0_i32_0 : i32, i32, i32
  }
  func.func @transform_1(%arg0: i32) -> (i32, i32) {
    %c0_i32 = arith.constant 0 : i32
    %c0_i32_0 = arith.constant 0 : i32
    %c0_i32_1 = arith.constant 0 : i32
    return %c0_i32, %c0_i32_0 : i32, i32
  }
  func.func @transform_2(%arg0: i32) -> (i32, i32) {
    %c0_i32 = arith.constant 0 : i32
    %c0_i32_0 = arith.constant 0 : i32
    %c0_i32_1 = arith.constant 0 : i32
    return %c0_i32, %c0_i32_0 : i32, i32
  }
  func.func @transform_3(%arg0: i32) -> (i32, i32, i32) {
    %c0_i32 = arith.constant 0 : i32
    %c0_i32_0 = arith.constant 0 : i32
    %c0_i32_1 = arith.constant 0 : i32
    return %arg0, %c0_i32, %c0_i32_0 : i32, i32, i32
  }
}

</mosaic_0001>

<llo_original>
// kernel: tpu_custom_call.1
$region0: #{tpu_custom_call.1}
  #allocation0 [shape = 'u32[]', space=smem, size = 0x4, offset = 0x4, fixed_abs, tag = 'smem constant byte address 0x4 - core index']
  #allocation1 [shape = 'u32[72,128]{1,0:T(1,128)}', space=vmem, size = 0x9000, scoped, tag = 'internal scratch']
  %s0 = inlined_call_operand.hbm [shape: bf16[2,8,32], index: 0, kind: input, shape index: {}]
  %s1 = inlined_call_operand.hbm [shape: bf16[32,48], index: 1, kind: input, shape index: {}]
  %s2 = inlined_call_operand.vmem [shape: f32[1,48], index: 2, kind: input, shape index: {}]
  %s3 = inlined_call_operand.hbm [shape: f32[2,8,16], index: 3, kind: output, shape index: {}]
  %s4 = sld [smem:[#allocation0]]
  $region30: #{tpu_custom_call.1} parent=0
    _
  %s6 = ssub.s32 1, %s4
  %s7 = scalar_select 0, %s6, %s4
  $region1: #{tpu_custom_call.1} parent=0
    #allocation2 [shape = 'u8[4096]{0}', space=vmem, size = 0x1000, scoped, tag = 'input window, operand 0, single buffered']
    #allocation3 [shape = 's32[1]{0}', space=sflag, size = 0x4, scoped, tag = 'scoped memory for tpu_custom_call.1']
    #allocation4 [shape = 's32[1]{0}', space=sflag, size = 0x4, scoped, tag = 'scoped memory for tpu_custom_call.1']
    #allocation5 [shape = 'u8[8192]{0}', space=vmem, size = 0x2000, scoped, tag = 'input window, operand 1, single buffered']
    #allocation6 [shape = 's32[1]{0}', space=sflag, size = 0x4, scoped, tag = 'scoped memory for tpu_custom_call.1']
    #allocation7 [shape = 'u8[8192]{0}', space=vmem, size = 0x2000, scoped, tag = 'output window, operand 0, single buffered']
    %8 = vsyncpa [#allocation3], 0
    %9 = vsyncpa [#allocation6], 0
    %10 = vsyncpa [#allocation4], 0
    // Predicated region
    $region2: #{tpu_custom_call.1} parent=1 // pred_check
      _
    $region3: #{tpu_custom_call.1} parent=1 // pred_check_branch
      %12 = sbr.rel (0) target = $region5
    $region4: #{tpu_custom_call.1} parent=1 // pred_region
      %14 = vsyncadd [#allocation3], 0
      %s15 = sshll.u32 %s0, 4
      %s16 = int_to_ptr.hbm [resolvable:$true] %s15
      %s17 = sshll.u32 [#allocation2], 4
      %s18 = int_to_ptr.vmem [resolvable:$true] %s17
      %23 = dma.hbm_to_vmem [thread:$0]  %s16, 128, %s18, [#allocation3], 64, 64, 4
    $region5: #{tpu_custom_call.1} parent=1 // pred_fallthru
      _
    // Predicated region
    $region6: #{tpu_custom_call.1} parent=1 // pred_check
      _
    $region7: #{tpu_custom_call.1} parent=1 // pred_check_branch
      %25 = sbr.rel (0) target = $region9
    $region8: #{tpu_custom_call.1} parent=1 // pred_region
      %27 = vsyncadd [#allocation6], 0
      %s28 = sshll.u32 %s1, 4
      %s29 = int_to_ptr.hbm [resolvable:$true] %s28
      %s30 = sshll.u32 [#allocation5], 4
      %s31 = int_to_ptr.vmem [resolvable:$true] %s30
      %36 = dma.hbm_to_vmem [thread:$0]  %s29, 256, %s31, [#allocation6], 64, 64, 4
    $region9: #{tpu_custom_call.1} parent=1 // pred_fallthru
      _
    // Predicated region
    $region10: #{tpu_custom_call.1} parent=1 // pred_check
      _
    $region11: #{tpu_custom_call.1} parent=1 // pred_check_branch
      %38 = sbr.rel (0) target = $region13
    $region12: #{tpu_custom_call.1} parent=1 // pred_region
      _
    $region13: #{tpu_custom_call.1} parent=1 // pred_fallthru
      _
    // Predicated region
    $region14: #{tpu_custom_call.1} parent=1 // pred_check
      _
    $region15: #{tpu_custom_call.1} parent=1 // pred_check_branch
      %40 = sbr.rel (0) target = $region17
    $region16: #{tpu_custom_call.1} parent=1 // pred_region
      %42 = dma.done [#allocation3], 128
    $region17: #{tpu_custom_call.1} parent=1 // pred_fallthru
      _
    // Predicated region
    $region18: #{tpu_custom_call.1} parent=1 // pred_check
      _
    $region19: #{tpu_custom_call.1} parent=1 // pred_check_branch
      %44 = sbr.rel (0) target = $region21
    $region20: #{tpu_custom_call.1} parent=1 // pred_region
      %46 = dma.done [#allocation6], 256
    $region21: #{tpu_custom_call.1} parent=1 // pred_fallthru
      _
    %v48 = vld [vmem:[#allocation2] sm:$0xf]
    %v49 = vld [vmem:[#allocation2 + $0x4] sm:$0xf]
    %v50 = vld [vmem:[#allocation5] sm:$0xf]
    %v51 = vld [vmem:[#allocation5 + $0x4] sm:$0xf]
    %v52 = vld [vmem:[#allocation5 + $0x8] sm:$0xf]
    %v53 = vld [vmem:[#allocation5 + $0xc] sm:$0xf]
    %v54 = vld [vmem:[%s2] sm:$0x1]
    %v56 = vperm.slane %v54, 0
    %v60 = vunpack.c.l.b16 %v48
    %v61 = vunpack.c.l.b16 %v49
    %v62 = vpack.c.b16 %v61, %v60
    %v67 = vunpack.c.l.b16 %v50
    %v68 = vunpack.c.l.b16 %v51
    %v69 = vunpack.c.l.b16 %v52
    %v70 = vunpack.c.l.b16 %v53
    %v71 = vpack.c.b16 %v68, %v67
    %v72 = vpack.c.b16 %v70, %v69
    %vm75 = vcmask 261120
    %v77 = vsel %vm75, %v62, 0
    %79 = vmatpush.bf16.msra.mxu0 0
    %80 = vmatpush.bf16.msra.mxu0 0
    %81 = vmatpush.bf16.msra.mxu0 0
    %82 = vmatpush.bf16.msra.mxu0 0
    %83 = vmatpush.bf16.msra.mxu0 0
    %84 = vmatpush.bf16.msra.mxu0 0
    %85 = vmatpush.bf16.msra.mxu0 %v72
    %86 = vmatpush.bf16.msra.mxu0 %v71
    %87 = vmatmul.bf16.gmra.mxu0 %v77
    %v88 = vpop.f32.mrf.mxu0
    %v89 = vadd.f32 %v56, %v88
    %v90 = vpop.f32.mrf.mxu0
    %v91 = vadd.f32 %v56, %v90
    %92 = vdwg.mxu0
    %v93 = vmul.f32 %v89, 0.25
    %v94 = vmul.f32 %v91, 0.25
    %v95 = vpack.c.bf16 %v93, %v93
    %v96 = vpack.c.bf16 %v94, %v94
    %v97 = vpack.c.bf16 %v89, %v89
    %v98 = vpack.c.bf16 %v91, %v91
    %v100 = vunpack.c.l.b16 %v97
    %v101 = vpack.c.b16 %v100, %v100
    %102 = vrot.lane.b32.xlu0 %v101, 112
    %v103 = vpop.permute.xlu0 %102
    %vm104 = vcmask 130048
    %v106 = vsel %vm104, %v95, 0
    %v109 = vsel %vm104, %v103, 0
    %111 = vmatpush.bf16.xpose.msra.mxu0 0
    %112 = vmatpush.bf16.xpose.msra.mxu0 0
    %113 = vmatpush.bf16.xpose.msra.mxu0 0
    %114 = vmatpush.bf16.xpose.msra.mxu0 0
    %115 = vmatpush.bf16.xpose.msra.mxu0 0
    %116 = vmatpush.bf16.xpose.msra.mxu0 0
    %117 = vmatpush.bf16.xpose.msra.mxu0 0
    %118 = vmatpush.bf16.xpose.msra.mxu0 %v109
    %119 = vmatmul.bf16.gmra.mxu0 %v106
    %v120 = vpop.f32.mrf.mxu0
    %v121 = vadd.f32 0.0, %v120
    %v122 = vpop.f32.mrf.mxu0
    %123 = vdwg.mxu0
    %v125 = vunpack.c.l.b16 %v98
    %v126 = vpack.c.b16 %v125, %v125
    %127 = vrot.lane.b32.xlu0 %v126, 112
    %v128 = vpop.permute.xlu0 %127
    %v130 = vsel %vm104, %v96, 0
    %v133 = vsel %vm104, %v128, 0
    %135 = vmatpush.bf16.xpose.msra.mxu0 0
    %136 = vmatpush.bf16.xpose.msra.mxu0 0
    %137 = vmatpush.bf16.xpose.msra.mxu0 0
    %138 = vmatpush.bf16.xpose.msra.mxu0 0
    %139 = vmatpush.bf16.xpose.msra.mxu0 0
    %140 = vmatpush.bf16.xpose.msra.mxu0 0
    %141 = vmatpush.bf16.xpose.msra.mxu0 0
    %142 = vmatpush.bf16.xpose.msra.mxu0 %v133
    %143 = vmatmul.bf16.gmra.mxu0 %v130
    %v144 = vpop.f32.mrf.mxu0
    %v145 = vadd.f32 0.0, %v144
    %v146 = vpop.f32.mrf.mxu0
    %147 = vdwg.mxu0
    %vm148 = vcmask 64512
    %v149 = vsel %vm148, %v121, -inf
    %150 = vmax.xlane.f32.xlu0 %v149
    %v151 = vpop.xlane.xlu0 %150
    %v152 = vsel %vm148, %v145, -inf
    %153 = vmax.xlane.f32.xlu0 %v152
    %v154 = vpop.xlane.xlu0 %153
    %v155 = vsub.f32 %v121, %v151
    %v156 = vsub.f32 %v145, %v154
    %v157 = vmul.f32 %v155, 1.442695
    %v158 = vpow.pop %v157
    %v159 = vmul.f32 %v156, 1.442695
    %v160 = vpow.pop %v159
    %v161 = vsel %vm148, %v158, 0.0
    %162 = vadd.xlane.f32.xlu0 %v161
    %v163 = vpop.xlane.xlu0 %162
    %v164 = vsel %vm148, %v160, 0.0
    %165 = vadd.xlane.f32.xlu0 %v164
    %v166 = vpop.xlane.xlu0 %165
    %v167 = vrcp.pop %v163
    %v168 = vrcp.pop %v166
    %v169 = vmul.f32 %v158, %v167
    %v170 = vmul.f32 %v160, %v168
    %v171 = vpack.c.bf16 %v169, %v169
    %v172 = vpack.c.bf16 %v170, %v170
    %173 = vrot.lane.b32.xlu0 %v101, 96
    %v174 = vpop.permute.xlu0 %173
    %v176 = vsel %vm148, %v171, 0
    %vm178 = vcmask 1043456
    %v180 = vsel %vm178, %v174, 0
    %182 = vmatpush.bf16.msra.mxu0 0
    %183 = vmatpush.bf16.msra.mxu0 0
    %184 = vmatpush.bf16.msra.mxu0 0
    %185 = vmatpush.bf16.msra.mxu0 0
    %186 = vmatpush.bf16.msra.mxu0 0
    %187 = vmatpush.bf16.msra.mxu0 0
    %188 = vmatpush.bf16.msra.mxu0 0
    %189 = vmatpush.bf16.msra.mxu0 %v180
    %190 = vmatmul.bf16.gmra.mxu0 %v176
    %v191 = vpop.f32.mrf.mxu0
    %v192 = vadd.f32 0.0, %v191
    %v193 = vpop.f32.mrf.mxu0
    %194 = vdwg.mxu0
    %195 = vrot.lane.b32.xlu0 %v126, 96
    %v196 = vpop.permute.xlu0 %195
    %v198 = vsel %vm148, %v172, 0
    %v201 = vsel %vm178, %v196, 0
    %203 = vmatpush.bf16.msra.mxu0 0
    %204 = vmatpush.bf16.msra.mxu0 0
    %205 = vmatpush.bf16.msra.mxu0 0
    %206 = vmatpush.bf16.msra.mxu0 0
    %207 = vmatpush.bf16.msra.mxu0 0
    %208 = vmatpush.bf16.msra.mxu0 0
    %209 = vmatpush.bf16.msra.mxu0 0
    %210 = vmatpush.bf16.msra.mxu0 %v201
    %211 = vmatmul.bf16.gmra.mxu0 %v198
    %v212 = vpop.f32.mrf.mxu0
    %v213 = vadd.f32 0.0, %v212
    %v214 = vpop.f32.mrf.mxu0
    %215 = vdwg.mxu0
    %216 = vst.msk [vmem:[#allocation7] sm:$0xff] %vm104, %v192
    %217 = vst.msk [vmem:[#allocation7 + $0x8] sm:$0xff] %vm104, %v213
    // Predicated region
    $region22: #{tpu_custom_call.1} parent=1 // pred_check
      _
    $region23: #{tpu_custom_call.1} parent=1 // pred_check_branch
      %219 = sbr.rel (0) target = $region25
    $region24: #{tpu_custom_call.1} parent=1 // pred_region
      %221 = vsyncadd [#allocation4], 0
      %s222 = sshll.u32 [#allocation7], 4
      %s223 = int_to_ptr.vmem [resolvable:$true] %s222
      %s224 = sshll.u32 %s3, 4
      %s225 = int_to_ptr.hbm [resolvable:$true] %s224
      %230 = dma.vmem_to_hbm [thread:$0]  %s223, 256, %s225, [#allocation4], 128, 128, 8
    $region25: #{tpu_custom_call.1} parent=1 // pred_fallthru
      _
    // Predicated region
    $region26: #{tpu_custom_call.1} parent=1 // pred_check
      _
    $region27: #{tpu_custom_call.1} parent=1 // pred_check_branch
      %232 = sbr.rel (0) target = $region29
    $region28: #{tpu_custom_call.1} parent=1 // pred_region
      %234 = dma.done [#allocation4], 256
    $region29: #{tpu_custom_call.1} parent=1 // pred_fallthru
      _
    %235 = vsyncpa [#allocation3], 1
    %236 = vsyncpa [#allocation6], 1
    %237 = vsyncpa [#allocation4], 1

</llo_original>
